<compile_context>
chip_gen: v5e
topology: v5e:2x2
jax: 0.10.0
libtpu: 0.0.40
codegen_flags: <defaults>
</compile_context>

<pallas_src>
import math

import jax
import jax.numpy as jnp
from jax.experimental import pallas as pl
from jax.experimental.pallas import tpu as pltpu

_MIB = 1024 * 1024


def build_pe(d_model: int, max_len: int) -> jnp.ndarray:
    """Build the 2-D sinusoidal positional-encoding buffer, matching the
    PyTorch __init__ exactly. Shape: (d_model, max_len, max_len), float32."""
    assert d_model % 4 == 0, "d_model must be divisible by 4"
    half = d_model // 2
    pos = jnp.arange(max_len, dtype=jnp.float32)[:, None]                 # (L, 1)
    div_term = jnp.exp(
        jnp.arange(0, half, 2, dtype=jnp.float32) * (-math.log(10000.0) / half)
    )                                                                     # (half//2,)
    sin_t = jnp.sin(pos * div_term)                                       # (L, half//2)
    cos_t = jnp.cos(pos * div_term)                                       # (L, half//2)

    n = half // 2
    # width-indexed terms: vary along last (W) axis, repeated along H
    sin_w = jnp.broadcast_to(sin_t.T[:, None, :], (n, max_len, max_len))
    cos_w = jnp.broadcast_to(cos_t.T[:, None, :], (n, max_len, max_len))
    # height-indexed terms: vary along H axis, repeated along W
    sin_h = jnp.broadcast_to(sin_t.T[:, :, None], (n, max_len, max_len))
    cos_h = jnp.broadcast_to(cos_t.T[:, :, None], (n, max_len, max_len))

    pe = jnp.zeros((d_model, max_len, max_len), dtype=jnp.float32)
    pe = pe.at[0:half:2].set(sin_w)
    pe = pe.at[1:half:2].set(cos_w)
    pe = pe.at[half::2].set(sin_h)
    pe = pe.at[half + 1::2].set(cos_h)
    return pe


def prepare_pe(pe: jnp.ndarray, H: int, W: int, dtype=jnp.float32) -> jnp.ndarray:
    """Slice, cast and flatten pe ONCE outside the hot path.
    pe: (d_model, max_len, max_len) -> (d_model*H*W,) in `dtype`."""
    C = pe.shape[0]
    return pe[:, :H, :W].astype(dtype).reshape(C * H * W)


def _add_pe_kernel(x_ref, pe_ref, o_ref):
    # x_ref / o_ref: (B, S, 128) sublane-dense block; pe_ref: (1, S, 128),
    # broadcast over the leading batch dim in-register.
    o_ref[...] = (x_ref[...] + pe_ref[...]).astype(o_ref.dtype)


def _vmem_capacity_bytes() -> int:
    """Per-core VMEM capacity; conservative (v7x-sized) fallback if the query
    is unavailable, which is safe on every generation."""
    try:
        cap = getattr(pltpu.get_tpu_info(), "vmem_capacity_bytes", None)
        if cap:
            return int(cap)
    except Exception:
        pass
    return 64 * _MIB


def _pick_block_rows(R: int, B: int, itemsize: int,
                     budget_bytes: int, min_steps: int = 4) -> int:
    """Rows (of 128 lanes) per block.

    Sublane-pack aligned, sized so the double-buffered footprint
    2 * (x + out + pe) stays under `budget_bytes`, and aiming for
    >= min_steps grid steps (v7x megacore split + read/write DMA overlap).
    Prefers an S that divides R exactly so every store is unmasked.
    """
    pack = max(8, 32 // itemsize)                       # 8 f32, 16 bf16, 32 int8
    per_row = 2 * (2 * B + 1) * 128 * itemsize          # 2 bufs * (x + out + pe)
    s_vmem = max(pack, (budget_bytes // per_row) // pack * pack)
    s_steps = max(pack, (R // min_steps) // pack * pack)
    s_target = max(pack, min(s_vmem, s_steps))
    if s_target >= R:
        return R                                        # full extent (grid of 1)
    # Bounded scan for a pack-multiple divisor of R (full blocks only).
    s = s_target
    for _ in range(64):
        if s < pack:
            break
        if R % s == 0:
            return s
        s -= pack
    return s_target                                     # accept a partial last block


def positional_encoding_2d(x: jnp.ndarray, pe_flat: jnp.ndarray,
                           *, force_pallas: bool = False,
                           donate: bool = False) -> jnp.ndarray:
    """x: (B, C, H, W); pe_flat: (C*H*W,) from prepare_pe. Returns x + pe.

    donate=True aliases the output onto x's HBM buffer (use only if the caller
    no longer needs x)."""
    B, C, H, W = x.shape
    N = C * H * W
    assert pe_flat.shape == (N,), f"pe_flat must be ({N},), got {pe_flat.shape}"
    itemsize = jnp.dtype(x.dtype).itemsize

    lane_aligned = (N % (8 * 128) == 0)       # need R = N/128 to be a multiple of 8
    tiny = B * N * itemsize < (1 * _MIB)      # launch overhead would dominate
    if (not lane_aligned) or (tiny and not force_pallas):
        # XLA's fused elementwise add is already at roofline for these cases.
        out = x.reshape(B, N) + pe_flat.astype(x.dtype)[None, :]
        return out.reshape(B, C, H, W).astype(x.dtype)

    R = N // 128
    x3 = x.reshape(B, R, 128)                 # free for default row-major NCHW
    pe3 = pe_flat.astype(x.dtype).reshape(1, R, 128)

    cap = _vmem_capacity_bytes()
    budget = min(3 * cap // 4, 56 * _MIB)     # ~48 MiB on v7x, ~56 MiB on v5e/v6e
    vmem_limit = int(min(cap, budget + 8 * _MIB))

    S = _pick_block_rows(R, B, itemsize, budget)
    grid = (pl.cdiv(R, S),)

    cost = pl.CostEstimate(
        flops=B * N,
        transcendentals=0,
        bytes_accessed=(2 * B + 1) * N * itemsize,
    )
    extra = {"input_output_aliases": {0: 0}} if donate else {}

    out3 = pl.pallas_call(
        _add_pe_kernel,
        out_shape=jax.ShapeDtypeStruct((B, R, 128), x.dtype),
        grid_spec=pltpu.PrefetchScalarGridSpec(
            num_scalar_prefetch=0,
            grid=grid,
            in_specs=[
                pl.BlockSpec((B, S, 128), lambda t: (0, t, 0)),   # x: all batches
                pl.BlockSpec((1, S, 128), lambda t: (0, t, 0)),   # pe: bcast in kernel
            ],
            out_specs=pl.BlockSpec((B, S, 128), lambda t: (0, t, 0)),
        ),
        compiler_params=pltpu.CompilerParams(
            dimension_semantics=("parallel",),   # two v7x TCs split the tiles
            vmem_limit_bytes=vmem_limit,
        ),
        cost_estimate=cost,
        **extra,
    )(x3, pe3)

    return out3.reshape(B, C, H, W)


if __name__ == "__main__":
    key = jax.random.PRNGKey(0)
    k1, k2 = jax.random.split(key)

    # Case 1: exercises the Pallas path. N = 8*32*32 = 8192 -> R = 64 rows of
    # 128 lanes, block rows S = 16 -> grid of 4 full (2,16,128) tiles.
    B, d_model, H, W = 2, 8, 32, 32
    max_len = 64
    x = jax.random.normal(k1, (B, d_model, H, W), dtype=jnp.float32)
    pe = build_pe(d_model, max_len)
    pe_flat = prepare_pe(pe, H, W, x.dtype)     # built/sliced once, outside hot path

    out = positional_encoding_2d(x, pe_flat, force_pallas=True)
    out = jax.block_until_ready(out)
    ref = x + pe[:, :H, :W]
    assert out.shape == (B, d_model, H, W)
    assert jnp.allclose(out, ref, atol=1e-6), "Pallas path mismatch vs reference"

    # Case 2: tiny input (original-spec-sized shapes) takes the XLA fallback.
    B2, d2, H2, W2 = 2, 4, 16, 16
    x_small = jax.random.normal(k2, (B2, d2, H2, W2), dtype=jnp.float32)
    pe_small = build_pe(d2, 32)
    out_small = positional_encoding_2d(x_small, prepare_pe(pe_small, H2, W2, x_small.dtype))
    out_small = jax.block_until_ready(out_small)
    assert jnp.allclose(out_small, x_small + pe_small[:, :H2, :W2], atol=1e-6), \
        "fallback path mismatch vs reference"

    # TODO(synk): dropout with p>0 would need pltpu.prng_seed/prng_random_bits
    # masking; the module default p=0 makes it the identity, so it is omitted.
    print("KERNEL_OK")
</pallas_src>

<mosaic_0001>
module attributes {stable_mosaic.version = 11 : i64} {
  func.func @_add_pe_kernel(%arg0: i32, %arg1: memref<2x16x128xf32, #tpu.memory_space<vmem>>, %arg2: memref<1x16x128xf32, #tpu.memory_space<vmem>>, %arg3: memref<2x16x128xf32, #tpu.memory_space<vmem>>) attributes {dimension_semantics = [#tpu.dimension_semantics<parallel>], iteration_bounds = array<i64: 4>, scalar_prefetch = 0 : i64, scratch_operands = 0 : i64, tpu.core_type = #tpu.core_type<tc>, window_params = [{transform_indices = @transform_0, window_bounds = array<i64: 2, 16, 128>}, {transform_indices = @transform_1, window_bounds = array<i64: 1, 16, 128>}, {transform_indices = @transform_2, window_bounds = array<i64: 2, 16, 128>}]} {
    %c0 = arith.constant 0 : index
    %c0_0 = arith.constant 0 : index
    %c0_1 = arith.constant 0 : index
    %0 = vector.load %arg1[%c0, %c0_0, %c0_1] : memref<2x16x128xf32, #tpu.memory_space<vmem>>, vector<2x16x128xf32>
    %c0_2 = arith.constant 0 : index
    %c0_3 = arith.constant 0 : index
    %c0_4 = arith.constant 0 : index
    %1 = vector.load %arg2[%c0_2, %c0_3, %c0_4] : memref<1x16x128xf32, #tpu.memory_space<vmem>>, vector<1x16x128xf32>
    %2 = vector.broadcast %1 : vector<1x16x128xf32> to vector<2x16x128xf32>
    %3 = arith.addf %0, %2 : vector<2x16x128xf32>
    %c0_5 = arith.constant 0 : index
    %c0_6 = arith.constant 0 : index
    %c0_7 = arith.constant 0 : index
    %4 = vector.load %arg3[%c0_5, %c0_6, %c0_7] : memref<2x16x128xf32, #tpu.memory_space<vmem>>, vector<2x16x128xf32>
    tpu.vector_store %arg3[%c0_5, %c0_6, %c0_7], %3 {strides = array<i32>} : memref<2x16x128xf32, #tpu.memory_space<vmem>>, vector<2x16x128xf32>,
    return
  }
  func.func @transform_0(%arg0: i32) -> (i32, i32, i32) {
    %c0_i32 = arith.constant 0 : i32
    %c0_i32_0 = arith.constant 0 : i32
    %c0_i32_1 = arith.constant 0 : i32
    return %c0_i32, %arg0, %c0_i32_0 : i32, i32, i32
  }
  func.func @transform_1(%arg0: i32) -> (i32, i32, i32) {
    %c0_i32 = arith.constant 0 : i32
    %c0_i32_0 = arith.constant 0 : i32
    %c0_i32_1 = arith.constant 0 : i32
    return %c0_i32, %arg0, %c0_i32_0 : i32, i32, i32
  }
  func.func @transform_2(%arg0: i32) -> (i32, i32, i32) {
    %c0_i32 = arith.constant 0 : i32
    %c0_i32_0 = arith.constant 0 : i32
    %c0_i32_1 = arith.constant 0 : i32
    return %c0_i32, %arg0, %c0_i32_0 : i32, i32, i32
  }
}

</mosaic_0001>

<llo_original>
// kernel: tpu_custom_call.1
$region0: #{tpu_custom_call.1}
  #allocation0 [shape = 'u32[]', space=smem, size = 0x4, offset = 0x4, fixed_abs, tag = 'smem constant byte address 0x4 - core index']
  #allocation1 [shape = 'u32[72,128]{1,0:T(1,128)}', space=vmem, size = 0x9000, scoped, tag = 'internal scratch']
  #allocation8 [shape = 's32[]', space=sflag, size = 0x4, offset = 0, fixed_abs, tag = 'sflag constant byte address 0x0 - dummy sync flag']
  #allocation10 [shape = 's32[]', space=sflag, size = 0x4, offset = 0, fixed_abs, tag = 'sflag constant byte address 0x0 - dummy sync flag']
  %s0 = inlined_call_operand.hbm [shape: f32[2,64,128], index: 0, kind: input, shape index: {}]
  %s1 = inlined_call_operand.hbm [shape: f32[1,64,128], index: 1, kind: input, shape index: {}]
  %s2 = inlined_call_operand.hbm [shape: f32[2,64,128], index: 2, kind: output, shape index: {}]
  %s3 = sld [smem:[#allocation0]]
  $region49: #{tpu_custom_call.1} parent=0
    _
  %s5 = ssub.s32 1, %s3
  %s6 = scalar_select 0, %s5, %s3
  $region1: #{tpu_custom_call.1} parent=0
    #allocation2 [shape = 'u8[32768]{0}', space=vmem, size = 0x8000, scoped, tag = 'input window, operand 0']
    #allocation3 [shape = 's32[2]{0}', space=sflag, size = 0x8, scoped, tag = 'scoped memory for tpu_custom_call.1']
    #allocation4 [shape = 's32[2]{0}', space=sflag, size = 0x8, scoped, tag = 'scoped memory for tpu_custom_call.1']
    #allocation5 [shape = 'u8[16384]{0}', space=vmem, size = 0x4000, scoped, tag = 'input window, operand 1']
    #allocation6 [shape = 's32[2]{0}', space=sflag, size = 0x8, scoped, tag = 'scoped memory for tpu_custom_call.1']
    #allocation7 [shape = 'u8[32768]{0}', space=vmem, size = 0x8000, scoped, tag = 'output window, operand 0']
    %7 = vsyncpa [#allocation3], 0
    %s8 = scalar_lea.sflag [#allocation3], 1
    %9 = vsyncpa %s8, 0
    %10 = vsyncpa [#allocation6], 0
    %s11 = scalar_lea.sflag [#allocation6], 1
    %12 = vsyncpa %s11, 0
    %13 = vsyncpa [#allocation4], 0
    %s14 = scalar_lea.sflag [#allocation4], 1
    %15 = vsyncpa %s14, 0
    loop: start=0, step=1, limit=6
    $region2: #{tpu_custom_call.1} parent=1 // loop_pre_header
      _
    $region3: #{tpu_custom_call.1} parent=1 // loop_header
      %s17 = sphi 0, %s21
      %p18 = scmp.ge.s32.totalorder %s17, 6
      %s27 = sphi 0, %s29
      %s30 = sphi 0, %s27
      %s31 = sphi 0, %s30
      %s47 = sphi 0, %s31
      %s53 = sphi 0, %s55
      %s56 = sphi 0, %s53
      %s57 = sphi 0, %s56
      %s73 = sphi 0, %s57
      %s79 = sphi 0, %s81
      %s82 = sphi 0, %s79
      %s83 = sphi 0, %s82
      %s99 = sphi 0, %s83
    $region4: #{tpu_custom_call.1} parent=1 // loop_header_branch
      %20 = sbr.rel (%p18) target = $region8
    $region5: #{tpu_custom_call.1} parent=1 // loop_body
      %s22 = ssub.s32 %s17, 1
      %s23 = ssub.s32 %s17, 2
      %s24 = sadd.s32 %s17, 1
      %s25 = ssub.s32 %s17, %s24
      %p26 = scmp.eq.s32.totalorder %s25, 0
      %s28 = sadd.s32 %s27, 1
      %s29 = scalar_select %p26, %s27, %s28
      %p32 = pneg %p26
      %p33 = scmp.eq.s32.totalorder %s17, 3
      %p34 = por %p32, %p33
      %p35 = scmp.ne.s32.totalorder %s27, %s30
      %p36 = scmp.eq.s32.totalorder %s17, 0
      %p37 = por %p35, %p36
      %p38 = scmp.ne.s32.totalorder %s27, %s30
      %p39 = scmp.eq.s32.totalorder %s22, 3
      %p40 = por %p38, %p39
      %p41 = scmp.ne.s32.totalorder %s30, %s31
      %p42 = scmp.eq.s32.totalorder %s22, 0
      %p43 = por %p41, %p42
      %p44 = scmp.ne.s32.totalorder %s30, %s31
      %p45 = scmp.eq.s32.totalorder %s23, 3
      %p46 = por %p44, %p45
      %p48 = scmp.ne.s32.totalorder %s31, %s47
      %p49 = scmp.eq.s32.totalorder %s23, 0
      %p50 = por %p48, %p49
      %s51 = ssub.s32 %s17, %s24
      %p52 = scmp.eq.s32.totalorder %s51, 0
      %s54 = sadd.s32 %s53, 1
      %s55 = scalar_select %p52, %s53, %s54
      %p58 = pneg %p52
      %p59 = scmp.eq.s32.totalorder %s17, 3
      %p60 = por %p58, %p59
      %p61 = scmp.ne.s32.totalorder %s53, %s56
      %p62 = scmp.eq.s32.totalorder %s17, 0
      %p63 = por %p61, %p62
      %p64 = scmp.ne.s32.totalorder %s53, %s56
      %p65 = scmp.eq.s32.totalorder %s22, 3
      %p66 = por %p64, %p65
      %p67 = scmp.ne.s32.totalorder %s56, %s57
      %p68 = scmp.eq.s32.totalorder %s22, 0
      %p69 = por %p67, %p68
      %p70 = scmp.ne.s32.totalorder %s56, %s57
      %p71 = scmp.eq.s32.totalorder %s23, 3
      %p72 = por %p70, %p71
      %p74 = scmp.ne.s32.totalorder %s57, %s73
      %p75 = scmp.eq.s32.totalorder %s23, 0
      %p76 = por %p74, %p75
      %s77 = ssub.s32 %s17, %s24
      %p78 = scmp.eq.s32.totalorder %s77, 0
      %s80 = sadd.s32 %s79, 1
      %s81 = scalar_select %p78, %s79, %s80
      %p84 = pneg %p78
      %p85 = scmp.eq.s32.totalorder %s17, 3
      %p86 = por %p84, %p85
      %p87 = scmp.ne.s32.totalorder %s79, %s82
      %p88 = scmp.eq.s32.totalorder %s17, 0
      %p89 = por %p87, %p88
      %p90 = scmp.ne.s32.totalorder %s79, %s82
      %p91 = scmp.eq.s32.totalorder %s22, 3
      %p92 = por %p90, %p91
      %p93 = scmp.ne.s32.totalorder %s82, %s83
      %p94 = scmp.eq.s32.totalorder %s22, 0
      %p95 = por %p93, %p94
      %p96 = scmp.ne.s32.totalorder %s82, %s83
      %p97 = scmp.eq.s32.totalorder %s23, 3
      %p98 = por %p96, %p97
      %p100 = scmp.ne.s32.totalorder %s83, %s99
      %p101 = scmp.eq.s32.totalorder %s23, 0
      %p102 = por %p100, %p101
      %p103 = scmp.le.s32.totalorder 1, %s17
      %p104 = scmp.lt.s32.totalorder %s17, 5
      %p105 = pnand %p103, %p104
      %p106 = pneg %p105
      // Predicated region
      $region9: #{tpu_custom_call.1} parent=5 // pred_check
        _
      $region10: #{tpu_custom_call.1} parent=5 // pred_check_branch
        %108 = sbr.rel (%p105) target = $region12
      $region11: #{tpu_custom_call.1} parent=5 // pred_region
        %s109 = ssub.s32 %s17, 1
      $region12: #{tpu_custom_call.1} parent=5 // pred_fallthru
        _
      %p110 = scmp.lt.s32.totalorder %s17, 4
      // Predicated region
      $region13: #{tpu_custom_call.1} parent=5 // pred_check
        %p111 = pneg %p110
      $region14: #{tpu_custom_call.1} parent=5 // pred_check_branch
        %113 = sbr.rel (%p111) target = $region16
      $region15: #{tpu_custom_call.1} parent=5 // pred_region
        // Predicated region
        $region17: #{tpu_custom_call.1} parent=15 // pred_check
          %p114 = pneg %p37
        $region18: #{tpu_custom_call.1} parent=15 // pred_check_branch
          %116 = sbr.rel (%p114) target = $region20
        $region19: #{tpu_custom_call.1} parent=15 // pred_region
          #allocation9 [shape = 'u32[6]{0}', space=smem, size = 0x18, scoped, tag = 'DMA stride descriptor']
          %s117 = sand.u32 %s27, 1
          %s118 = scalar_lea.sflag [#allocation3], %s117
          %s119 = sand.u32 %s27, 1
          %s120 = smul.addr %s119, 32
          %s121 = scalar_lea.vmem [#allocation2], %s120
          %s122 = smul.u32 2, %s17
          %124 = vsyncadd %s118, 0
          %s125 = smul.addr %s122, 8
          %s126 = scalar_lea.hbm %s0, %s125
          %s128 = sshll.u32 1, 14
          %s129 = sxor.u32 4294967295, %s128
          %s131 = sld [smem:[#allocation0]]
          %s132 = sadd.s32 2, %s131
          %s134 = sshll.u32 7, 26
          %s135 = sxor.u32 4294967295, %s134
          %s136 = sand.u32 0, %s135
          %s137 = sshll.u32 %s132, 26
          %s138 = sor.u32 %s136, %s137
          %s139 = sshll.u32 %s126, 4
          %s140 = int_to_ptr.hbm [resolvable:$true] %s139
          %s141 = sshll.u32 %s121, 4
          %s142 = int_to_ptr.vmem [resolvable:$true] %s141
          %148 = sst [smem:[#allocation9]] 1024
          %s149 = scalar_lea.smem [#allocation9], 1
          %150 = sst [smem:[%s149]] 256
          %s151 = scalar_lea.smem [#allocation9], 2
          %152 = sst [smem:[%s151]] 2
          %s153 = scalar_lea.smem [#allocation9], 3
          %154 = sst [smem:[%s153]] 128
          %s155 = scalar_lea.smem [#allocation9], 4
          %156 = sst [smem:[%s155]] 128
          %s157 = scalar_lea.smem [#allocation9], 5
          %158 = sst [smem:[%s157]] 8
          %160 = dma.general %s140, 512, %s142, %s118, [#allocation8], [#allocation9], %s138, 0
        $region20: #{tpu_custom_call.1} parent=15 // pred_fallthru
          _
        // Predicated region
        $region21: #{tpu_custom_call.1} parent=15 // pred_check
          %p161 = pneg %p63
        $region22: #{tpu_custom_call.1} parent=15 // pred_check_branch
          %163 = sbr.rel (%p161) target = $region24
        $region23: #{tpu_custom_call.1} parent=15 // pred_region
          %s164 = sand.u32 %s53, 1
          %s165 = scalar_lea.sflag [#allocation6], %s164
          %s166 = sand.u32 %s53, 1
          %s167 = smul.addr %s166, 16
          %s168 = scalar_lea.vmem [#allocation5], %s167
          %s169 = smul.u32 2, %s17
          %171 = vsyncadd %s165, 0
          %s172 = smul.addr %s169, 8
          %s173 = scalar_lea.hbm %s1, %s172
          %s174 = sshll.u32 %s173, 4
          %s175 = int_to_ptr.hbm [resolvable:$true] %s174
          %s176 = sshll.u32 %s168, 4
          %s177 = int_to_ptr.vmem [resolvable:$true] %s176
          %182 = dma.hbm_to_vmem [thread:$0]  %s175, 256, %s177, %s165, 128, 128, 8
        $region24: #{tpu_custom_call.1} parent=15 // pred_fallthru
          _
      $region16: #{tpu_custom_call.1} parent=5 // pred_fallthru
        _
      %p183 = scmp.le.s32.totalorder 1, %s17
      %p184 = scmp.lt.s32.totalorder %s17, 5
      %p185 = pnand %p183, %p184
      %p186 = pneg %p185
      // Predicated region
      $region25: #{tpu_custom_call.1} parent=5 // pred_check
        _
      $region26: #{tpu_custom_call.1} parent=5 // pred_check_branch
        %188 = sbr.rel (%p185) target = $region28
      $region27: #{tpu_custom_call.1} parent=5 // pred_region
        %s189 = ssub.s32 %s17, 1
        %s190 = sand.u32 %s30, 1
        %s191 = scalar_lea.sflag [#allocation3], %s190
        %s192 = sand.u32 %s30, 1
        %s193 = smul.addr %s192, 32
        %s194 = scalar_lea.vmem [#allocation2], %s193
        // Predicated region
        $region29: #{tpu_custom_call.1} parent=27 // pred_check
          %p195 = pneg %p43
        $region30: #{tpu_custom_call.1} parent=27 // pred_check_branch
          %197 = sbr.rel (%p195) target = $region32
        $region31: #{tpu_custom_call.1} parent=27 // pred_region
          %199 = dma.done %s191, 512
        $region32: #{tpu_custom_call.1} parent=27 // pred_fallthru
          _
        %s200 = sand.u32 %s56, 1
        %s201 = scalar_lea.sflag [#allocation6], %s200
        %s202 = sand.u32 %s56, 1
        %s203 = smul.addr %s202, 16
        %s204 = scalar_lea.vmem [#allocation5], %s203
        // Predicated region
        $region33: #{tpu_custom_call.1} parent=27 // pred_check
          %p205 = pneg %p69
        $region34: #{tpu_custom_call.1} parent=27 // pred_check_branch
          %207 = sbr.rel (%p205) target = $region36
        $region35: #{tpu_custom_call.1} parent=27 // pred_region
          %209 = dma.done %s201, 256
        $region36: #{tpu_custom_call.1} parent=27 // pred_fallthru
          _
        %s210 = sand.u32 %s30, 1
        %s211 = scalar_lea.sflag [#allocation3], %s210
        %s212 = sand.u32 %s30, 1
        %s213 = smul.addr %s212, 32
        %s214 = scalar_lea.vmem [#allocation2], %s213
        %p215 = pneg %p43
        %p216 = pneg %p40
        %s217 = sand.u32 %s56, 1
        %s218 = scalar_lea.sflag [#allocation6], %s217
        %s219 = sand.u32 %s56, 1
        %s220 = smul.addr %s219, 16
        %s221 = scalar_lea.vmem [#allocation5], %s220
        %p222 = pneg %p69
        %p223 = pneg %p66
        %p224 = pneg %p95
        %p225 = pneg %p92
        %s226 = sand.u32 %s82, 1
        %s227 = scalar_lea.sflag [#allocation4], %s226
        %s228 = sand.u32 %s82, 1
        %s229 = smul.addr %s228, 32
        %s230 = scalar_lea.vmem [#allocation7], %s229
        %s231 = smul.u32 2, %s22
        %s232 = smul.u32 2, %s22
        %s233 = smul.u32 2, %s22
        %v234 = vld [vmem:[%s194] sm:$0xff]
        %v235 = vld [vmem:[%s194 + $0x8] sm:$0xff]
        %v236 = vld [vmem:[%s194 + $0x10] sm:$0xff]
        %v237 = vld [vmem:[%s194 + $0x18] sm:$0xff]
        %v238 = vld [vmem:[%s204] sm:$0xff]
        %v239 = vld [vmem:[%s204 + $0x8] sm:$0xff]
        %v240 = vadd.f32 %v234, %v238
        %v241 = vadd.f32 %v235, %v239
        %v242 = vadd.f32 %v236, %v238
        %v243 = vadd.f32 %v237, %v239
        %244 = vst [vmem:[%s230] sm:$0xff] %v240
        %245 = vst [vmem:[%s230 + $0x8] sm:$0xff] %v241
        %246 = vst [vmem:[%s230 + $0x10] sm:$0xff] %v242
        %247 = vst [vmem:[%s230 + $0x18] sm:$0xff] %v243
        %s248 = sand.u32 %s82, 1
        %s249 = scalar_lea.sflag [#allocation4], %s248
        %s250 = sand.u32 %s82, 1
        %s251 = smul.addr %s250, 32
        %s252 = scalar_lea.vmem [#allocation7], %s251
        // Predicated region
        $region37: #{tpu_custom_call.1} parent=27 // pred_check
          %p253 = pneg %p92
        $region38: #{tpu_custom_call.1} parent=27 // pred_check_branch
          %255 = sbr.rel (%p253) target = $region40
        $region39: #{tpu_custom_call.1} parent=27 // pred_region
          #allocation11 [shape = 'u32[6]{0}', space=smem, size = 0x18, scoped, tag = 'DMA stride descriptor']
          %s256 = smul.u32 2, %s22
          %258 = vsyncadd %s249, 0
          %s259 = smul.addr %s256, 8
          %s260 = scalar_lea.hbm %s2, %s259
          %s262 = sshll.u32 1, 14
          %s263 = sxor.u32 4294967295, %s262
          %s266 = sshll.u32 7, 18
          %s267 = sxor.u32 4294967295, %s266
          %s268 = sand.u32 0, %s267
          %s270 = sor.u32 %s268, 0
          %s271 = sshll.u32 %s252, 4
          %s272 = int_to_ptr.vmem [resolvable:$true] %s271
          %s273 = sshll.u32 %s260, 4
          %s274 = int_to_ptr.hbm [resolvable:$true] %s273
          %280 = sst [smem:[#allocation11]] 256
          %s281 = scalar_lea.smem [#allocation11], 1
          %282 = sst [smem:[%s281]] 1024
          %s283 = scalar_lea.smem [#allocation11], 2
          %284 = sst [smem:[%s283]] 2
          %s285 = scalar_lea.smem [#allocation11], 3
          %286 = sst [smem:[%s285]] 128
          %s287 = scalar_lea.smem [#allocation11], 4
          %288 = sst [smem:[%s287]] 128
          %s289 = scalar_lea.smem [#allocation11], 5
          %290 = sst [smem:[%s289]] 8
          %292 = dma.general %s272, 512, %s274, %s249, [#allocation10], [#allocation11], %s270, 0
        $region40: #{tpu_custom_call.1} parent=27 // pred_fallthru
          _
      $region28: #{tpu_custom_call.1} parent=5 // pred_fallthru
        _
      %p293 = scmp.le.s32.totalorder 2, %s17
      // Predicated region
      $region41: #{tpu_custom_call.1} parent=5 // pred_check
        %p294 = pneg %p293
      $region42: #{tpu_custom_call.1} parent=5 // pred_check_branch
        %296 = sbr.rel (%p294) target = $region44
      $region43: #{tpu_custom_call.1} parent=5 // pred_region
        %s297 = ssub.s32 %s17, 2
        // Predicated region
        $region45: #{tpu_custom_call.1} parent=43 // pred_check
          %p298 = pneg %p98
        $region46: #{tpu_custom_call.1} parent=43 // pred_check_branch
          %300 = sbr.rel (%p298) target = $region48
        $region47: #{tpu_custom_call.1} parent=43 // pred_region
          %s301 = sand.u32 %s83, 1
          %s302 = scalar_lea.sflag [#allocation4], %s301
          %s303 = sand.u32 %s83, 1
          %s304 = smul.addr %s303, 32
          %s305 = scalar_lea.vmem [#allocation7], %s304
          %307 = dma.done %s302, 512
        $region48: #{tpu_custom_call.1} parent=43 // pred_fallthru
          _
      $region44: #{tpu_custom_call.1} parent=5 // pred_fallthru
        _
    $region6: #{tpu_custom_call.1} parent=1 // loop_footer
      %s21 = sadd.s32 1, %s17
    $region7: #{tpu_custom_call.1} parent=1 // loop_footer_branch
      %16 = sbr.rel target = $region3
    $region8: #{tpu_custom_call.1} parent=1 // loop_exit
      _
    %308 = vsyncpa [#allocation3], 1
    %s309 = scalar_lea.sflag [#allocation3], 1
    %310 = vsyncpa %s309, 1
    %311 = vsyncpa [#allocation6], 1
    %s312 = scalar_lea.sflag [#allocation6], 1
    %313 = vsyncpa %s312, 1
    %314 = vsyncpa [#allocation4], 1
    %s315 = scalar_lea.sflag [#allocation4], 1
    %316 = vsyncpa %s315, 1

</llo_original>
